<compile_context>
chip_gen: v7x
topology: tpu7x:2x2x1
jax: 0.10.0
libtpu: 0.0.40
codegen_flags: <defaults>
</compile_context>

<pallas_src>
import functools
import math

import jax
import jax.numpy as jnp
import numpy as np
from jax.experimental import pallas as pl
from jax.experimental.pallas import tpu as pltpu


# ---------------------------------------------------------------------------
# Kernel 1: mask -> normalized x/y embeddings (cumsum + normalize).
# ---------------------------------------------------------------------------
def _embed_kernel(nm_ref, tril_ref, triu_ref, pos_ref, *, eps):
    """Grid = (B,).

    nm_ref   : (1, H, W) bf16     not_mask for one batch element (exact 0/1)
    tril_ref : (H, H)    bf16     lower-triangular ones  (cumsum along H)
    triu_ref : (W, W)    bf16     upper-triangular ones  (cumsum along W)
    pos_ref  : (1, 2, H, W) f32   output: [x_embed, y_embed]
    """
    nm = nm_ref[0]                                           # (H, W) bf16
    H, W = nm.shape
    # Cumsums as MXU matmuls; 0/1 inputs with f32 accumulation -> exact.
    y_cum = jnp.dot(tril_ref[...], nm, preferred_element_type=jnp.float32)
    x_cum = jnp.dot(nm, triu_ref[...], preferred_element_type=jnp.float32)
    # Same arithmetic as the reference: (cumsum - 0.5) / (last + eps).
    # Exact division (NOT approx reciprocal) per the correctness review.
    pos_ref[0, 0] = (x_cum - 0.5) / (x_cum[:, W - 1:W] + eps)
    pos_ref[0, 1] = (y_cum - 0.5) / (y_cum[H - 1:H, :] + eps)
    # TODO(synk): for very large H/W the (H,H)/(W,W) constants and the single
    # per-batch block should be tiled / vmem_limit_bytes raised; fine for the
    # feature-map sizes this module sees.


# ---------------------------------------------------------------------------
# Kernel 2: embeddings -> sin/cos channels (carries ~all of the HBM traffic).
# ---------------------------------------------------------------------------
def _encode_kernel(emb_ref, out_ref, *, depth, exp_sine, reseed_every):
    """Grid = (B, SR // sr_tile); both axes parallel (no cross-step state).

    emb_ref : (1, 2, sr_tile, SL) f32        [x_embed, y_embed] spatial tile
    out_ref : (1, 4*depth, sr_tile, SL) f32  channels in the final order:
              [sin(b1 x), sin(b1 y), ..., sin(bd y), cos(b1 x), ..., cos(bd y)]
    """
    xe = emb_ref[0, 0]                                       # (sr_tile, SL)
    ye = emb_ref[0, 1]

    if not exp_sine:
        # Per-base increments for the angle-addition recurrence (VPU only).
        pi = jnp.float32(math.pi)
        sp_x, cp_x = jnp.sin(pi * xe), jnp.cos(pi * xe)
        sp_y, cp_y = jnp.sin(pi * ye), jnp.cos(pi * ye)

    s_x = c_x = s_y = c_y = None
    for i in range(depth):
        base = (2 ** i) if exp_sine else (i + 1)
        if i % reseed_every == 0:
            # Exact seed on the (otherwise idle) EUP; identical argument
            # construction to the reference: float32(base*pi) * embed.
            bpi = jnp.float32(base * math.pi)
            s_x, c_x = jnp.sin(bpi * xe), jnp.cos(bpi * xe)
            s_y, c_y = jnp.sin(bpi * ye), jnp.cos(bpi * ye)
        # Store each channel the moment it is produced (no stacked slab).
        out_ref[0, 2 * i] = s_x
        out_ref[0, 2 * i + 1] = s_y
        out_ref[0, 2 * depth + 2 * i] = c_x
        out_ref[0, 2 * depth + 2 * i + 1] = c_y
        # Advance to the next base on the VPU, unless the next base gets a
        # fresh EUP seed (or this was the last base).
        if i + 1 < depth and (i + 1) % reseed_every != 0:
            if exp_sine:        # next base = 2*b : double angle
                s_x, c_x = 2.0 * s_x * c_x, (c_x - s_x) * (c_x + s_x)
                s_y, c_y = 2.0 * s_y * c_y, (c_y - s_y) * (c_y + s_y)
            else:               # next base = b + 1 : angle addition
                s_x, c_x = s_x * cp_x + c_x * sp_x, c_x * cp_x - s_x * sp_x
                s_y, c_y = s_y * cp_y + c_y * sp_y, c_y * cp_y - s_y * sp_y


# ---------------------------------------------------------------------------
# Wrapper
# ---------------------------------------------------------------------------
def _vmem_budget_bytes():
    """Conservative default that fits every generation's scoped-VMEM default,
    grown when the hardware reports more capacity (review item 5)."""
    try:
        cap = getattr(pltpu.get_tpu_info(), "vmem_capacity_bytes", None)
        if cap:
            return max(4 << 20, min(cap // 4, 32 << 20))
    except Exception:      # no TPU visible at trace time / interpret mode
        pass
    return 8 << 20


def _pick_row_tile(SR, depth, SL, budget_bytes):
    """Largest sublane-row tile (divides SR; multiple of 8 when actually
    tiling) whose double-buffered input+output blocks fit the VMEM budget."""
    per_row = (16 + 32 * depth) * SL    # bytes per spatial row per grid step
    if SR * per_row <= budget_bytes:
        return SR
    limit = budget_bytes // per_row
    best = 0
    for t in range(8, SR, 8):
        if SR % t == 0 and t <= limit:
            best = t
    # If no multiple-of-8 divisor fits, fall back to the full extent rather
    # than emit a sub-(8,128) second-to-minor block dimension.
    return best if best else SR


def position_embedding_sine(x, mask, num_pos_feats=8, temperature=10000,
                            normalize=False, sine_type="lin_sine",
                            reseed_every=4):
    """Pallas forward of COTR's PositionEmbeddingSine.

    x    : (B, C, H, W)  — only the shape is used (as in the PyTorch module)
    mask : (B, H, W) bool, True = padded pixel
    returns (B, 4*(num_pos_feats//2), H, W) float32, matching the module.

    `temperature` / `normalize` are accepted for API parity but unused,
    exactly as in this variant of the PyTorch module.
    """
    del temperature, normalize
    B, _, H, W = x.shape
    assert mask.shape == (B, H, W)
    depth = num_pos_feats // 2
    assert depth >= 1
    if sine_type not in ("lin_sine", "exp_sine"):
        raise ValueError(sine_type)
    exp_sine = sine_type == "exp_sine"
    eps = 1e-6

    # bf16 (exact 0/1) halves HBM/VMEM traffic of mask & constants [items 6,7]
    not_mask = jnp.logical_not(mask).astype(jnp.bfloat16)
    rh = jnp.arange(H)
    rw = jnp.arange(W)
    tril_h = (rh[:, None] >= rh[None, :]).astype(jnp.bfloat16)    # (H, H)
    triu_w = (rw[:, None] <= rw[None, :]).astype(jnp.bfloat16)    # (W, W)

    # ---- call 1: mask -> normalized embeddings (O(B*H*W), tiny) -----------
    pos = pl.pallas_call(
        functools.partial(_embed_kernel, eps=eps),
        out_shape=jax.ShapeDtypeStruct((B, 2, H, W), jnp.float32),
        grid_spec=pltpu.PrefetchScalarGridSpec(
            num_scalar_prefetch=0,
            grid=(B,),
            in_specs=[
                pl.BlockSpec((1, H, W), lambda b: (b, 0, 0)),
                pl.BlockSpec((H, H), lambda b: (0, 0)),
                pl.BlockSpec((W, W), lambda b: (0, 0)),
            ],
            out_specs=pl.BlockSpec((1, 2, H, W), lambda b: (b, 0, 0, 0))),
        compiler_params=pltpu.CompilerParams(
            dimension_semantics=("parallel",)),
    )(not_mask, tril_h, triu_w)

    # ---- lane/sublane-dense spatial layout for the heavy kernel [item 3] --
    S = H * W
    if S % 128 == 0:
        SL = 128               # lanes fully dense
    else:
        SL = S                 # TODO(synk): pad S to a lane multiple for odd shapes
    SR = S // SL
    pos = pos.reshape(B, 2, SR, SL)          # contiguous -> free reshape

    sr_tile = _pick_row_tile(SR, depth, SL, _vmem_budget_bytes())
    grid = (B, SR // sr_tile)

    # ---- call 2: embeddings -> sin/cos channels (all of the traffic) ------
    out = pl.pallas_call(
        functools.partial(_encode_kernel, depth=depth, exp_sine=exp_sine,
                          reseed_every=max(1, reseed_every)),
        out_shape=jax.ShapeDtypeStruct((B, 4 * depth, SR, SL), jnp.float32),
        grid_spec=pltpu.PrefetchScalarGridSpec(
            num_scalar_prefetch=0,
            grid=grid,
            in_specs=[pl.BlockSpec((1, 2, sr_tile, SL),
                                   lambda b, s: (b, 0, s, 0))],
            out_specs=pl.BlockSpec((1, 4 * depth, sr_tile, SL),
                                   lambda b, s: (b, 0, s, 0))),
        compiler_params=pltpu.CompilerParams(
            dimension_semantics=("parallel", "parallel")),
    )(pos)

    # Channels are already in the module's order; reshape is free.   [item 1]
    return out.reshape(B, 4 * depth, H, W)


# ---------------------------------------------------------------------------
# Pure-JAX reference mirroring the PyTorch module, for verification.
# ---------------------------------------------------------------------------
def _reference(mask, num_pos_feats=8, sine_type="lin_sine"):
    depth = num_pos_feats // 2
    bases = ([i + 1 for i in range(depth)] if sine_type == "lin_sine"
             else [2 ** i for i in range(depth)])
    not_mask = jnp.logical_not(mask)
    y_embed = jnp.cumsum(not_mask, axis=1, dtype=jnp.float32)
    x_embed = jnp.cumsum(not_mask, axis=2, dtype=jnp.float32)
    eps = 1e-6
    y_embed = (y_embed - 0.5) / (y_embed[:, -1:, :] + eps)
    x_embed = (x_embed - 0.5) / (x_embed[:, :, -1:] + eps)
    pos = jnp.stack([x_embed, y_embed], axis=-1)             # (B, H, W, 2)
    out = jnp.concatenate(
        [jnp.sin(b * math.pi * pos) for b in bases]
        + [jnp.cos(b * math.pi * pos) for b in bases], axis=-1)
    return jnp.transpose(out, (0, 3, 1, 2))                  # (B, 4*depth, H, W)


if __name__ == "__main__":
    key = jax.random.PRNGKey(0)
    B, C, H, W = 2, 4, 16, 16
    num_pos_feats = 8          # depth = 4 -> 16 output channels

    x = jax.random.normal(key, (B, C, H, W), dtype=jnp.float32)

    # Padding masks (True = padded).  Every row and every column keeps at
    # least one valid pixel: in fully padded rows/columns the normalization
    # denominator is eps, the embedding is ~ -5e5, and sin(b*pi*(-5e5)) is
    # ill-conditioned in float32 (1 ULP of the argument exceeds 2*pi), so any
    # two correct implementations legitimately differ by O(1) there; those
    # positions are padding and never consumed downstream.
    mask = np.ones((B, H, W), dtype=bool)
    mask[0] = False                   # batch 0: fully valid
    mask[1, :12, :] = False           # batch 1: ragged valid region
    mask[1, 12:, :10] = False
    mask = jnp.asarray(mask)

    for sine_type in ("lin_sine", "exp_sine"):
        out = position_embedding_sine(x, mask, num_pos_feats=num_pos_feats,
                                      sine_type=sine_type)
        out = jax.block_until_ready(out)
        assert out.shape == (B, 2 * num_pos_feats, H, W)
        # Mirrors the module's `assert torch.isnan(out).any() == False`.
        assert not bool(jnp.isnan(out).any())
        ref = _reference(mask, num_pos_feats=num_pos_feats,
                         sine_type=sine_type)
        # sin/cos values are O(1); 1e-4 absolute is a meaningful check while
        # leaving margin for the recurrence (<~1e-5) and Mosaic-vs-XLA
        # div/sin rounding differences.
        np.testing.assert_allclose(np.asarray(out), np.asarray(ref),
                                   rtol=1e-4, atol=1e-4)
    print("KERNEL_OK")
</pallas_src>

<mosaic_0001>
module attributes {stable_mosaic.version = 11 : i64} {
  func.func @_embed_kernel(%arg0: i32, %arg1: memref<1x16x16xbf16, #tpu.memory_space<vmem>>, %arg2: memref<16x16xbf16, #tpu.memory_space<vmem>>, %arg3: memref<16x16xbf16, #tpu.memory_space<vmem>>, %arg4: memref<1x2x16x16xf32, #tpu.memory_space<vmem>>) attributes {dimension_semantics = [#tpu.dimension_semantics<parallel>], iteration_bounds = array<i64: 2>, scalar_prefetch = 0 : i64, scratch_operands = 0 : i64, tpu.core_type = #tpu.core_type<tc>, window_params = [{transform_indices = @transform_0, window_bounds = array<i64: 1, 16, 16>}, {pipeline_mode = #tpu.pipeline_mode<synchronous>, transform_indices = @transform_1, window_bounds = array<i64: 16, 16>}, {pipeline_mode = #tpu.pipeline_mode<synchronous>, transform_indices = @transform_2, window_bounds = array<i64: 16, 16>}, {transform_indices = @transform_3, window_bounds = array<i64: 1, 2, 16, 16>}]} {
    %c0 = arith.constant 0 : index
    %c0_0 = arith.constant 0 : index
    %c0_1 = arith.constant 0 : index
    %0 = vector.load %arg1[%c0, %c0_0, %c0_1] : memref<1x16x16xbf16, #tpu.memory_space<vmem>>, vector<1x16x16xbf16>
    %1 = vector.shape_cast %0 : vector<1x16x16xbf16> to vector<16x16xbf16>
    %c0_2 = arith.constant 0 : index
    %c0_3 = arith.constant 0 : index
    %2 = vector.load %arg2[%c0_2, %c0_3] : memref<16x16xbf16, #tpu.memory_space<vmem>>, vector<16x16xbf16>
    %cst = arith.constant dense<0.000000e+00> : vector<16x16xf32>
    %3 = tpu.matmul %2, %1, %cst {dimension_numbers = #tpu.dot_dimension_numbers<[1], [0], [0], [1], [0, 0, 1, 1], [], []>} : vector<16x16xbf16>, vector<16x16xbf16>, vector<16x16xf32> -> vector<16x16xf32>
    %c0_4 = arith.constant 0 : index
    %c0_5 = arith.constant 0 : index
    %4 = vector.load %arg3[%c0_4, %c0_5] : memref<16x16xbf16, #tpu.memory_space<vmem>>, vector<16x16xbf16>
    %cst_6 = arith.constant dense<0.000000e+00> : vector<16x16xf32>
    %5 = tpu.matmul %1, %4, %cst_6 {dimension_numbers = #tpu.dot_dimension_numbers<[1], [0], [0], [1], [0, 0, 1, 1], [], []>} : vector<16x16xbf16>, vector<16x16xbf16>, vector<16x16xf32> -> vector<16x16xf32>
    %cst_7 = arith.constant 5.000000e-01 : f32
    %6 = vector.broadcast %cst_7 : f32 to vector<16x16xf32>
    %7 = arith.subf %5, %6 : vector<16x16xf32>
    %8 = vector.extract_strided_slice %5 {offsets = [0, 15], sizes = [16, 1], strides = [1, 1]} : vector<16x16xf32> to vector<16x1xf32>
    %cst_8 = arith.constant 9.99999997E-7 : f32
    %9 = vector.broadcast %cst_8 : f32 to vector<16x1xf32>
    %10 = arith.addf %8, %9 : vector<16x1xf32>
    %11 = vector.broadcast %10 : vector<16x1xf32> to vector<16x16xf32>
    %12 = arith.divf %7, %11 : vector<16x16xf32>
    %c0_9 = arith.constant 0 : index
    %c0_10 = arith.constant 0 : index
    %c0_11 = arith.constant 0 : index
    %c0_12 = arith.constant 0 : index
    %13 = vector.load %arg4[%c0_9, %c0_10, %c0_11, %c0_12] : memref<1x2x16x16xf32, #tpu.memory_space<vmem>>, vector<1x1x16x16xf32>
    %14 = vector.shape_cast %13 : vector<1x1x16x16xf32> to vector<16x16xf32>
    %15 = vector.shape_cast %12 : vector<16x16xf32> to vector<1x1x16x16xf32>
    tpu.vector_store %arg4[%c0_9, %c0_10, %c0_11, %c0_12], %15 {strides = array<i32>} : memref<1x2x16x16xf32, #tpu.memory_space<vmem>>, vector<1x1x16x16xf32>,
    %cst_13 = arith.constant 5.000000e-01 : f32
    %16 = vector.broadcast %cst_13 : f32 to vector<16x16xf32>
    %17 = arith.subf %3, %16 : vector<16x16xf32>
    %18 = vector.extract_strided_slice %3 {offsets = [15, 0], sizes = [1, 16], strides = [1, 1]} : vector<16x16xf32> to vector<1x16xf32>
    %cst_14 = arith.constant 9.99999997E-7 : f32
    %19 = vector.broadcast %cst_14 : f32 to vector<1x16xf32>
    %20 = arith.addf %18, %19 : vector<1x16xf32>
    %21 = vector.broadcast %20 : vector<1x16xf32> to vector<16x16xf32>
    %22 = arith.divf %17, %21 : vector<16x16xf32>
    %c0_15 = arith.constant 0 : index
    %c1 = arith.constant 1 : index
    %c0_16 = arith.constant 0 : index
    %c0_17 = arith.constant 0 : index
    %23 = vector.load %arg4[%c0_15, %c1, %c0_16, %c0_17] : memref<1x2x16x16xf32, #tpu.memory_space<vmem>>, vector<1x1x16x16xf32>
    %24 = vector.shape_cast %23 : vector<1x1x16x16xf32> to vector<16x16xf32>
    %25 = vector.shape_cast %22 : vector<16x16xf32> to vector<1x1x16x16xf32>
    tpu.vector_store %arg4[%c0_15, %c1, %c0_16, %c0_17], %25 {strides = array<i32>} : memref<1x2x16x16xf32, #tpu.memory_space<vmem>>, vector<1x1x16x16xf32>,
    return
  }
  func.func @transform_0(%arg0: i32) -> (i32, i32, i32) {
    %c0_i32 = arith.constant 0 : i32
    %c0_i32_0 = arith.constant 0 : i32
    %c0_i32_1 = arith.constant 0 : i32
    return %arg0, %c0_i32, %c0_i32_0 : i32, i32, i32
  }
  func.func @transform_1(%arg0: i32) -> (i32, i32) {
    %c0_i32 = arith.constant 0 : i32
    %c0_i32_0 = arith.constant 0 : i32
    %c0_i32_1 = arith.constant 0 : i32
    return %c0_i32, %c0_i32_0 : i32, i32
  }
  func.func @transform_2(%arg0: i32) -> (i32, i32) {
    %c0_i32 = arith.constant 0 : i32
    %c0_i32_0 = arith.constant 0 : i32
    %c0_i32_1 = arith.constant 0 : i32
    return %c0_i32, %c0_i32_0 : i32, i32
  }
  func.func @transform_3(%arg0: i32) -> (i32, i32, i32, i32) {
    %c0_i32 = arith.constant 0 : i32
    %c0_i32_0 = arith.constant 0 : i32
    %c0_i32_1 = arith.constant 0 : i32
    %c0_i32_2 = arith.constant 0 : i32
    return %arg0, %c0_i32, %c0_i32_0, %c0_i32_1 : i32, i32, i32, i32
  }
}

</mosaic_0001>

<llo_original>
// kernel: tpu_custom_call.1
$region0: #{tpu_custom_call.1}
  #allocation0 [shape = 'u32[]', space=smem, size = 0x4, offset = 0x4, fixed_abs, tag = 'smem constant byte address 0x4 - core index']
  #allocation1 [shape = 'u32[144,128]{1,0:T(1,128)}', space=vmem, size = 0x12000, scoped, tag = 'internal scratch']
  %s0 = inlined_call_operand.hbm [shape: bf16[2,16,16], index: 0, kind: input, shape index: {}]
  %s1 = inlined_call_operand.hbm [shape: bf16[16,16], index: 1, kind: input, shape index: {}]
  %s2 = inlined_call_operand.hbm [shape: bf16[16,16], index: 2, kind: input, shape index: {}]
  %s3 = inlined_call_operand.hbm [shape: f32[2,2,16,16], index: 3, kind: output, shape index: {}]
  %s4 = sld [smem:[#allocation0]]
  $region57: #{tpu_custom_call.1} parent=0
    _
  %s6 = ssub.s32 1, %s4
  %s7 = scalar_select 0, %s6, %s4
  $region1: #{tpu_custom_call.1} parent=0
    #allocation2 [shape = 'u8[8192]{0}', space=vmem, size = 0x2000, scoped, tag = 'input window, operand 0']
    #allocation3 [shape = 's32[2]{0}', space=sflag, size = 0x8, scoped, tag = 'scoped memory for tpu_custom_call.1']
    #allocation4 [shape = 's32[2]{0}', space=sflag, size = 0x8, scoped, tag = 'scoped memory for tpu_custom_call.1']
    #allocation5 [shape = 'u8[4096]{0}', space=vmem, size = 0x1000, scoped, tag = 'input window, operand 1, single buffered']
    #allocation6 [shape = 's32[1]{0}', space=sflag, size = 0x4, scoped, tag = 'scoped memory for tpu_custom_call.1']
    #allocation7 [shape = 'u8[4096]{0}', space=vmem, size = 0x1000, scoped, tag = 'input window, operand 2, single buffered']
    #allocation8 [shape = 'u8[32768]{0}', space=vmem, size = 0x8000, scoped, tag = 'output window, operand 0']
    %8 = vsyncpa [#allocation3], 0
    %s9 = scalar_lea.sflag [#allocation3], 1
    %10 = vsyncpa %s9, 0
    %11 = vsyncpa [#allocation6], 0
    %12 = vsyncpa [#allocation4], 0
    %s13 = scalar_lea.sflag [#allocation4], 1
    %14 = vsyncpa %s13, 0
    loop: start=0, step=1, limit=4
    $region2: #{tpu_custom_call.1} parent=1 // loop_pre_header
      _
    $region3: #{tpu_custom_call.1} parent=1 // loop_header
      %s16 = sphi 0, %s20
      %p17 = scmp.ge.s32.totalorder %s16, 4
      %s26 = sphi 0, %s28
      %s29 = sphi 0, %s26
      %s30 = sphi 0, %s29
      %s46 = sphi 0, %s30
      %s50 = sphi 0, %s50
      %s52 = sphi 0, %s50
      %s53 = sphi 0, %s52
      %s67 = sphi 0, %s53
      %s71 = sphi 0, %s71
      %s73 = sphi 0, %s71
      %s74 = sphi 0, %s73
      %s88 = sphi 0, %s74
      %s94 = sphi 0, %s96
      %s97 = sphi 0, %s94
      %s98 = sphi 0, %s97
      %s114 = sphi 0, %s98
    $region4: #{tpu_custom_call.1} parent=1 // loop_header_branch
      %19 = sbr.rel (%p17) target = $region8
    $region5: #{tpu_custom_call.1} parent=1 // loop_body
      %s21 = ssub.s32 %s16, 1
      %s22 = ssub.s32 %s16, 2
      %s23 = sadd.s32 %s16, 1
      %s24 = ssub.s32 %s16, %s23
      %p25 = scmp.eq.s32.totalorder %s24, 0
      %s27 = sadd.s32 %s26, 1
      %s28 = scalar_select %p25, %s26, %s27
      %p31 = pneg %p25
      %p32 = scmp.eq.s32.totalorder %s16, 1
      %p33 = por %p31, %p32
      %p34 = scmp.ne.s32.totalorder %s26, %s29
      %p35 = scmp.eq.s32.totalorder %s16, 0
      %p36 = por %p34, %p35
      %p37 = scmp.ne.s32.totalorder %s26, %s29
      %p38 = scmp.eq.s32.totalorder %s21, 1
      %p39 = por %p37, %p38
      %p40 = scmp.ne.s32.totalorder %s29, %s30
      %p41 = scmp.eq.s32.totalorder %s21, 0
      %p42 = por %p40, %p41
      %p43 = scmp.ne.s32.totalorder %s29, %s30
      %p44 = scmp.eq.s32.totalorder %s22, 1
      %p45 = por %p43, %p44
      %p47 = scmp.ne.s32.totalorder %s30, %s46
      %p48 = scmp.eq.s32.totalorder %s22, 0
      %p49 = por %p47, %p48
      %s51 = sadd.s32 %s50, 1
      %p54 = scmp.eq.s32.totalorder %s16, 1
      %p55 = scmp.ne.s32.totalorder %s50, %s52
      %p56 = scmp.eq.s32.totalorder %s16, 0
      %p57 = por %p55, %p56
      %p58 = scmp.ne.s32.totalorder %s50, %s52
      %p59 = scmp.eq.s32.totalorder %s21, 1
      %p60 = por %p58, %p59
      %p61 = scmp.ne.s32.totalorder %s52, %s53
      %p62 = scmp.eq.s32.totalorder %s21, 0
      %p63 = por %p61, %p62
      %p64 = scmp.ne.s32.totalorder %s52, %s53
      %p65 = scmp.eq.s32.totalorder %s22, 1
      %p66 = por %p64, %p65
      %p68 = scmp.ne.s32.totalorder %s53, %s67
      %p69 = scmp.eq.s32.totalorder %s22, 0
      %p70 = por %p68, %p69
      %s72 = sadd.s32 %s71, 1
      %p75 = scmp.eq.s32.totalorder %s16, 1
      %p76 = scmp.ne.s32.totalorder %s71, %s73
      %p77 = scmp.eq.s32.totalorder %s16, 0
      %p78 = por %p76, %p77
      %p79 = scmp.ne.s32.totalorder %s71, %s73
      %p80 = scmp.eq.s32.totalorder %s21, 1
      %p81 = por %p79, %p80
      %p82 = scmp.ne.s32.totalorder %s73, %s74
      %p83 = scmp.eq.s32.totalorder %s21, 0
      %p84 = por %p82, %p83
      %p85 = scmp.ne.s32.totalorder %s73, %s74
      %p86 = scmp.eq.s32.totalorder %s22, 1
      %p87 = por %p85, %p86
      %p89 = scmp.ne.s32.totalorder %s74, %s88
      %p90 = scmp.eq.s32.totalorder %s22, 0
      %p91 = por %p89, %p90
      %s92 = ssub.s32 %s16, %s23
      %p93 = scmp.eq.s32.totalorder %s92, 0
      %s95 = sadd.s32 %s94, 1
      %s96 = scalar_select %p93, %s94, %s95
      %p99 = pneg %p93
      %p100 = scmp.eq.s32.totalorder %s16, 1
      %p101 = por %p99, %p100
      %p102 = scmp.ne.s32.totalorder %s94, %s97
      %p103 = scmp.eq.s32.totalorder %s16, 0
      %p104 = por %p102, %p103
      %p105 = scmp.ne.s32.totalorder %s94, %s97
      %p106 = scmp.eq.s32.totalorder %s21, 1
      %p107 = por %p105, %p106
      %p108 = scmp.ne.s32.totalorder %s97, %s98
      %p109 = scmp.eq.s32.totalorder %s21, 0
      %p110 = por %p108, %p109
      %p111 = scmp.ne.s32.totalorder %s97, %s98
      %p112 = scmp.eq.s32.totalorder %s22, 1
      %p113 = por %p111, %p112
      %p115 = scmp.ne.s32.totalorder %s98, %s114
      %p116 = scmp.eq.s32.totalorder %s22, 0
      %p117 = por %p115, %p116
      %p118 = scmp.le.s32.totalorder 1, %s16
      %p119 = scmp.lt.s32.totalorder %s16, 3
      %p120 = pnand %p118, %p119
      %p121 = pneg %p120
      // Predicated region
      $region9: #{tpu_custom_call.1} parent=5 // pred_check
        _
      $region10: #{tpu_custom_call.1} parent=5 // pred_check_branch
        %123 = sbr.rel (%p120) target = $region12
      $region11: #{tpu_custom_call.1} parent=5 // pred_region
        %s124 = ssub.s32 %s16, 1
        // Predicated region
        $region13: #{tpu_custom_call.1} parent=11 // pred_check
          %p125 = pneg %p63
        $region14: #{tpu_custom_call.1} parent=11 // pred_check_branch
          %127 = sbr.rel (%p125) target = $region16
        $region15: #{tpu_custom_call.1} parent=11 // pred_region
          %s129 = ssub.s32 128, 128
          %130 = vsyncadd [#allocation6], %s129
          %s131 = sshll.u32 [#allocation5], 4
          %s132 = int_to_ptr.vmem [resolvable:$true] %s131
          %137 = dma.hbm_to_vmem [thread:$0]  %s1, 128, %s132, [#allocation6], 64, 64, 4
        $region16: #{tpu_custom_call.1} parent=11 // pred_fallthru
          _
        // Predicated region
        $region17: #{tpu_custom_call.1} parent=11 // pred_check
          %p138 = pneg %p84
        $region18: #{tpu_custom_call.1} parent=11 // pred_check_branch
          %140 = sbr.rel (%p138) target = $region20
        $region19: #{tpu_custom_call.1} parent=11 // pred_region
          %s142 = ssub.s32 128, 128
          %143 = vsyncadd [#allocation6], %s142
          %s144 = sshll.u32 [#allocation7], 4
          %s145 = int_to_ptr.vmem [resolvable:$true] %s144
          %150 = dma.hbm_to_vmem [thread:$0]  %s2, 128, %s145, [#allocation6], 64, 64, 4
        $region20: #{tpu_custom_call.1} parent=11 // pred_fallthru
          _
      $region12: #{tpu_custom_call.1} parent=5 // pred_fallthru
        _
      %p151 = scmp.lt.s32.totalorder %s16, 2
      // Predicated region
      $region21: #{tpu_custom_call.1} parent=5 // pred_check
        %p152 = pneg %p151
      $region22: #{tpu_custom_call.1} parent=5 // pred_check_branch
        %154 = sbr.rel (%p152) target = $region24
      $region23: #{tpu_custom_call.1} parent=5 // pred_region
        // Predicated region
        $region25: #{tpu_custom_call.1} parent=23 // pred_check
          %p155 = pneg %p36
        $region26: #{tpu_custom_call.1} parent=23 // pred_check_branch
          %157 = sbr.rel (%p155) target = $region28
        $region27: #{tpu_custom_call.1} parent=23 // pred_region
          %s158 = sand.u32 %s26, 1
          %s159 = scalar_lea.sflag [#allocation3], %s158
          %s160 = sand.u32 %s26, 1
          %s161 = smul.addr %s160, 8
          %s162 = scalar_lea.vmem [#allocation2], %s161
          %s164 = ssub.s32 128, 128
          %165 = vsyncadd %s159, %s164
          %s166 = smul.addr %s16, 2
          %s167 = smul.addr %s166, 64
          %s168 = scalar_lea.hbm %s0, %s167
          %s169 = sshll.u32 %s162, 4
          %s170 = int_to_ptr.vmem [resolvable:$true] %s169
          %175 = dma.hbm_to_vmem [thread:$0]  %s168, 128, %s170, %s159, 64, 64, 4
        $region28: #{tpu_custom_call.1} parent=23 // pred_fallthru
          _
      $region24: #{tpu_custom_call.1} parent=5 // pred_fallthru
        _
      %p176 = scmp.le.s32.totalorder 1, %s16
      %p177 = scmp.lt.s32.totalorder %s16, 3
      %p178 = pnand %p176, %p177
      %p179 = pneg %p178
      // Predicated region
      $region29: #{tpu_custom_call.1} parent=5 // pred_check
        _
      $region30: #{tpu_custom_call.1} parent=5 // pred_check_branch
        %181 = sbr.rel (%p178) target = $region32
      $region31: #{tpu_custom_call.1} parent=5 // pred_region
        %s182 = ssub.s32 %s16, 1
        %s183 = sand.u32 %s29, 1
        %s184 = scalar_lea.sflag [#allocation3], %s183
        %s185 = sand.u32 %s29, 1
        %s186 = smul.addr %s185, 8
        %s187 = scalar_lea.vmem [#allocation2], %s186
        // Predicated region
        $region33: #{tpu_custom_call.1} parent=31 // pred_check
          %p188 = pneg %p42
        $region34: #{tpu_custom_call.1} parent=31 // pred_check_branch
          %190 = sbr.rel (%p188) target = $region36
        $region35: #{tpu_custom_call.1} parent=31 // pred_region
          %191 = dma.done %s184, 128
        $region36: #{tpu_custom_call.1} parent=31 // pred_fallthru
          _
        // Predicated region
        $region37: #{tpu_custom_call.1} parent=31 // pred_check
          %p192 = pneg %p63
        $region38: #{tpu_custom_call.1} parent=31 // pred_check_branch
          %194 = sbr.rel (%p192) target = $region40
        $region39: #{tpu_custom_call.1} parent=31 // pred_region
          %195 = dma.done [#allocation6], 128
        $region40: #{tpu_custom_call.1} parent=31 // pred_fallthru
          _
        // Predicated region
        $region41: #{tpu_custom_call.1} parent=31 // pred_check
          %p196 = pneg %p84
        $region42: #{tpu_custom_call.1} parent=31 // pred_check_branch
          %198 = sbr.rel (%p196) target = $region44
        $region43: #{tpu_custom_call.1} parent=31 // pred_region
          %199 = dma.done [#allocation6], 128
        $region44: #{tpu_custom_call.1} parent=31 // pred_fallthru
          _
        %s200 = sand.u32 %s29, 1
        %s201 = scalar_lea.sflag [#allocation3], %s200
        %s202 = sand.u32 %s29, 1
        %s203 = smul.addr %s202, 8
        %s204 = scalar_lea.vmem [#allocation2], %s203
        %p205 = pneg %p42
        %p206 = pneg %p39
        %p207 = pneg %p63
        %p208 = pneg %p60
        %p209 = pneg %p84
        %p210 = pneg %p81
        %p211 = pneg %p110
        %p212 = pneg %p107
        %s213 = sand.u32 %s97, 1
        %s214 = scalar_lea.sflag [#allocation4], %s213
        %s215 = sand.u32 %s97, 1
        %s216 = smul.addr %s215, 32
        %s217 = scalar_lea.vmem [#allocation8], %s216
        %v219 = vld [vmem:[%s187] sm:$0xf]
        %v220 = vld [vmem:[%s187 + $0x4] sm:$0xf]
        %v221 = vld [vmem:[#allocation5] sm:$0xf]
        %v222 = vld [vmem:[#allocation5 + $0x4] sm:$0xf]
        %v225 = vunpack.c.l.b16 %v221
        %v226 = vunpack.c.l.b16 %v222
        %v227 = vpack.c.b16 %v226, %v225
        %v230 = vunpack.c.l.b16 %v219
        %v231 = vunpack.c.l.b16 %v220
        %v232 = vpack.c.b16 %v231, %v230
        %vm234 = vcmask 130048
        %v236 = vsel %vm234, %v227, 0
        %238 = vmatprep.subr.bf16.mxu0 0
        %239 = vmatpush1.bf16.msra.mxu0 %v232
        %240 = vmatprep.subr.bf16.mxu0 0
        %241 = vmatpush1.bf16.msra.mxu0 0
        %242 = vmatprep.subr.bf16.mxu0 0
        %243 = vmatpush1.bf16.msra.mxu0 0
        %244 = vmatprep.subr.bf16.mxu0 0
        %245 = vmatpush1.bf16.msra.mxu0 0
        %246 = vmatprep.subr.bf16.mxu0 0
        %247 = vmatpush1.bf16.msra.mxu0 0
        %248 = vmatprep.subr.bf16.mxu0 0
        %249 = vmatpush1.bf16.msra.mxu0 0
        %250 = vmatprep.subr.bf16.mxu0 0
        %251 = vmatpush1.bf16.msra.mxu0 0
        %252 = vmatprep.subr.bf16.mxu0 0
        %253 = vmatpush1.bf16.msra.mxu0 0
        %254 = vmatprep.subr.bf16.mxu0 0
        %255 = vmatpush1.bf16.msra.mxu0 0
        %256 = vmatprep.subr.bf16.mxu0 0
        %257 = vmatpush1.bf16.msra.mxu0 0
        %258 = vmatprep.subr.bf16.mxu0 0
        %259 = vmatpush1.bf16.msra.mxu0 0
        %260 = vmatprep.subr.bf16.mxu0 0
        %261 = vmatpush1.bf16.msra.mxu0 0
        %262 = vmatprep.subr.bf16.mxu0 0
        %263 = vmatpush1.bf16.msra.mxu0 0
        %264 = vmatprep.subr.bf16.mxu0 0
        %265 = vmatpush1.bf16.msra.mxu0 0
        %266 = vmatprep.subr.bf16.mxu0 0
        %267 = vmatpush1.bf16.msra.mxu0 0
        %268 = vmatprep.subr.bf16.mxu0 0
        %269 = vmatpush1.bf16.msra.mxu0 0
        %270 = vmatprep.mubr.bf16.mxu0 0
        %271 = vmatmul.mubr.bf16.gmra.mrb[0].mxu0 %v236
        %v272 = vpop.f32.mrb[0].mxu0
        %v273 = vadd.f32 0.0, %v272
        %v274 = vpop.f32.mrb[0].mxu0
        %v275 = vpop.f32.mrb[0].mxu0
        %v276 = vadd.f32 0.0, %v275
        %v277 = vpop.f32.mrb[0].mxu0
        %278 = vdwg.mxu0
        %v279 = vld [vmem:[#allocation7] sm:$0xf]
        %v280 = vld [vmem:[#allocation7 + $0x4] sm:$0xf]
        %v283 = vunpack.c.l.b16 %v279
        %v284 = vunpack.c.l.b16 %v280
        %v285 = vpack.c.b16 %v284, %v283
        %v288 = vsel %vm234, %v232, 0
        %290 = vmatprep.subr.bf16.mxu0 0
        %291 = vmatpush1.bf16.msra.mxu0 %v285
        %292 = vmatprep.subr.bf16.mxu0 0
        %293 = vmatpush1.bf16.msra.mxu0 0
        %294 = vmatprep.subr.bf16.mxu0 0
        %295 = vmatpush1.bf16.msra.mxu0 0
        %296 = vmatprep.subr.bf16.mxu0 0
        %297 = vmatpush1.bf16.msra.mxu0 0
        %298 = vmatprep.subr.bf16.mxu0 0
        %299 = vmatpush1.bf16.msra.mxu0 0
        %300 = vmatprep.subr.bf16.mxu0 0
        %301 = vmatpush1.bf16.msra.mxu0 0
        %302 = vmatprep.subr.bf16.mxu0 0
        %303 = vmatpush1.bf16.msra.mxu0 0
        %304 = vmatprep.subr.bf16.mxu0 0
        %305 = vmatpush1.bf16.msra.mxu0 0
        %306 = vmatprep.subr.bf16.mxu0 0
        %307 = vmatpush1.bf16.msra.mxu0 0
        %308 = vmatprep.subr.bf16.mxu0 0
        %309 = vmatpush1.bf16.msra.mxu0 0
        %310 = vmatprep.subr.bf16.mxu0 0
        %311 = vmatpush1.bf16.msra.mxu0 0
        %312 = vmatprep.subr.bf16.mxu0 0
        %313 = vmatpush1.bf16.msra.mxu0 0
        %314 = vmatprep.subr.bf16.mxu0 0
        %315 = vmatpush1.bf16.msra.mxu0 0
        %316 = vmatprep.subr.bf16.mxu0 0
        %317 = vmatpush1.bf16.msra.mxu0 0
        %318 = vmatprep.subr.bf16.mxu0 0
        %319 = vmatpush1.bf16.msra.mxu0 0
        %320 = vmatprep.subr.bf16.mxu0 0
        %321 = vmatpush1.bf16.msra.mxu0 0
        %322 = vmatprep.mubr.bf16.mxu0 0
        %323 = vmatmul.mubr.bf16.gmra.mrb[0].mxu0 %v288
        %v324 = vpop.f32.mrb[0].mxu0
        %v325 = vadd.f32 0.0, %v324
        %v326 = vpop.f32.mrb[0].mxu0
        %v327 = vpop.f32.mrb[0].mxu0
        %v328 = vadd.f32 0.0, %v327
        %v329 = vpop.f32.mrb[0].mxu0
        %330 = vdwg.mxu0
        %v331 = vsub.f32 %v325, 0.5
        %v332 = vsub.f32 %v328, 0.5
        %v333 = vadd.f32 %v325, 1e-06
        %v334 = vadd.f32 %v328, 1e-06
        %336 = vset.pattern.permute.xlu0 15
        %337 = vperm.xlu0 %336, %v333
        %v338 = vpop.permute.xlu0 %337
        %341 = vset.pattern.permute.xlu0 15
        %342 = vperm.xlu0 %341, %v334
        %v343 = vpop.permute.xlu0 %342
        %v345 = vrcp.pop %v338
        %v346 = vmul.f32 %v331, %v345
        %v347 = vrcp.pop %v343
        %v348 = vmul.f32 %v332, %v347
        %349 = vst.msk [vmem:[%s217] sm:$0xff] %vm234, %v346
        %350 = vst.msk [vmem:[%s217 + $0x8] sm:$0xff] %vm234, %v348
        %v351 = vsub.f32 %v273, 0.5
        %v352 = vsub.f32 %v276, 0.5
        %v353 = vadd.f32 %v276, 1e-06
        %v354 = vlaneseq
        %v355 = vshrl.u32 %v354, 7
        %v356 = vsub.s32 7, %v355
        %v357 = vrot.slane %v353, %v356
        %v358 = vrcp.pop %v357
        %v359 = vmul.f32 %v351, %v358
        %v360 = vmul.f32 %v352, %v358
        %s361 = scalar_lea.vmem %s217, 16 [#allocation8]
        %362 = vst.msk [vmem:[%s361] sm:$0xff] %vm234, %v359
        %363 = vst.msk [vmem:[%s361 + $0x8] sm:$0xff] %vm234, %v360
        %s364 = sand.u32 %s97, 1
        %s365 = scalar_lea.sflag [#allocation4], %s364
        %s366 = sand.u32 %s97, 1
        %s367 = smul.addr %s366, 32
        %s368 = scalar_lea.vmem [#allocation8], %s367
        // Predicated region
        $region45: #{tpu_custom_call.1} parent=31 // pred_check
          %p369 = pneg %p107
        $region46: #{tpu_custom_call.1} parent=31 // pred_check_branch
          %371 = sbr.rel (%p369) target = $region48
        $region47: #{tpu_custom_call.1} parent=31 // pred_region
          %s373 = ssub.s32 512, 512
          %374 = vsyncadd %s365, %s373
          %s375 = smul.addr %s21, 4
          %s376 = smul.addr %s375, 128
          %s377 = scalar_lea.hbm %s3, %s376
          %s378 = sshll.u32 %s368, 4
          %s379 = int_to_ptr.vmem [resolvable:$true] %s378
          %384 = dma.vmem_to_hbm [thread:$0]  %s379, 512, %s377, %s365, 128, 128, 8
        $region48: #{tpu_custom_call.1} parent=31 // pred_fallthru
          _
      $region32: #{tpu_custom_call.1} parent=5 // pred_fallthru
        _
      %p385 = scmp.le.s32.totalorder 2, %s16
      // Predicated region
      $region49: #{tpu_custom_call.1} parent=5 // pred_check
        %p386 = pneg %p385
      $region50: #{tpu_custom_call.1} parent=5 // pred_check_branch
        %388 = sbr.rel (%p386) target = $region52
      $region51: #{tpu_custom_call.1} parent=5 // pred_region
        %s389 = ssub.s32 %s16, 2
        // Predicated region
        $region53: #{tpu_custom_call.1} parent=51 // pred_check
          %p390 = pneg %p113
        $region54: #{tpu_custom_call.1} parent=51 // pred_check_branch
          %392 = sbr.rel (%p390) target = $region56
        $region55: #{tpu_custom_call.1} parent=51 // pred_region
          %s393 = sand.u32 %s98, 1
          %s394 = scalar_lea.sflag [#allocation4], %s393
          %s395 = sand.u32 %s98, 1
          %s396 = smul.addr %s395, 32
          %s397 = scalar_lea.vmem [#allocation8], %s396
          %398 = dma.done %s394, 512
        $region56: #{tpu_custom_call.1} parent=51 // pred_fallthru
          _
      $region52: #{tpu_custom_call.1} parent=5 // pred_fallthru
        _
    $region6: #{tpu_custom_call.1} parent=1 // loop_footer
      %s20 = sadd.s32 1, %s16
    $region7: #{tpu_custom_call.1} parent=1 // loop_footer_branch
      %15 = sbr.rel target = $region3
    $region8: #{tpu_custom_call.1} parent=1 // loop_exit
      _
    %399 = vsyncpa [#allocation3], 1
    %s400 = scalar_lea.sflag [#allocation3], 1
    %401 = vsyncpa %s400, 1
    %402 = vsyncpa [#allocation6], 1
    %403 = vsyncpa [#allocation4], 1
    %s404 = scalar_lea.sflag [#allocation4], 1
    %405 = vsyncpa %s404, 1

</llo_original>
